<compile_context>
chip_gen: v7x
topology: tpu7x:2x2x1
jax: 0.10.0
libtpu: 0.0.40
codegen_flags: <defaults>
</compile_context>

<pallas_src>
import jax
import jax.numpy as jnp
from jax.experimental import pallas as pl
from jax.experimental.pallas import tpu as pltpu

NEG_SLOPE = 0.01  # F.leaky_relu default negative_slope


def _make_kernel(B, Cin, Cout, H, W, KH, KW):
    HW = H * W
    taps = [(dy, dx) for dy in range(KH) for dx in range(KW)]

    def kernel(x_ref, w_ref, b_ref, o_ref):
        # x_ref: (B*Cin, HW)        VMEM f32  batch packed on sublanes, HW on lanes
        # w_ref: (Cout, Cin*KH*KW)  VMEM f32  OIHW weights (row-major per out channel)
        # b_ref: (Cout, 1)          VMEM f32
        # o_ref: (B, Cout, HW)      VMEM f32  lane-dense NCHW-ordered output slab
        x = x_ref[...]                                   # (B*Cin, HW)
        w = w_ref[...]                                   # (Cout, Cin*KH*KW)
        bias_col = b_ref[...]                            # (Cout, 1)

        # One XLU roll per tap, shared across batch and input channels.
        # shifted[t][r, h*W + w] == x[r, (h+dy)*W + (w+dx)]  (mod HW; wrap-around
        # only touches positions dropped by the wrapper's valid-region slice).
        shifted = []
        for dy, dx in taps:
            off = dy * W + dx
            shifted.append(x if off == 0 else pltpu.roll(x, shift=HW - off, axis=1))

        # Pre-slice the 27 (Cout, 1) weight columns once (shared across batch).
        w_cols = []
        for dy, dx in taps:
            cols = []
            for cin in range(Cin):
                k = (cin * KH + dy) * KW + dx
                cols.append(w[:, k:k + 1])               # (Cout, 1)
            w_cols.append(cols)

        for b in range(B):                               # B is static -> unrolled
            acc = jnp.zeros((Cout, HW), dtype=jnp.float32)
            for t in range(len(taps)):
                for cin in range(Cin):
                    row = shifted[t][b * Cin + cin:b * Cin + cin + 1, :]   # (1, HW)
                    # (Cout,1) x (1,HW) broadcast FMA on the full (Cout,HW) tile.
                    acc = acc + w_cols[t][cin] * row
            y = acc + bias_col                           # bias, lane-broadcast
            y = jnp.maximum(y, NEG_SLOPE * y)            # leaky_relu
            o_ref[b] = y.astype(o_ref.dtype)             # aligned (Cout, HW) store

    return kernel


def cnn_forward(x_nchw, weight_oihw, bias):
    """x_nchw: (B, 3, H, W); weight_oihw: (6, 3, 3, 3); bias: (6,). Returns NCHW output."""
    B, Cin, H, W = x_nchw.shape
    Cout, _, KH, KW = weight_oihw.shape
    Ho, Wo = H - KH + 1, W - KW + 1
    HW = H * W

    # Pure reshapes only -- no wrapper-side transposes / HBM layout shuffles.
    x_flat = x_nchw.reshape(B * Cin, HW).astype(jnp.float32)
    w_mat = weight_oihw.reshape(Cout, Cin * KH * KW).astype(jnp.float32)
    b_col = bias.reshape(Cout, 1).astype(jnp.float32)

    kernel = _make_kernel(B, Cin, Cout, H, W, KH, KW)

    out_full = pl.pallas_call(
        kernel,
        out_shape=jax.ShapeDtypeStruct((B, Cout, HW), jnp.float32),
        # No grid: a single step over whole (tiny) arrays resident in VMEM.
        in_specs=[
            pl.BlockSpec(memory_space=pltpu.MemorySpace.VMEM),   # x  (B*Cin, HW)
            pl.BlockSpec(memory_space=pltpu.MemorySpace.VMEM),   # w  (Cout, Cin*KH*KW)
            pl.BlockSpec(memory_space=pltpu.MemorySpace.VMEM),   # b  (Cout, 1)
        ],
        out_specs=pl.BlockSpec(memory_space=pltpu.MemorySpace.VMEM),
    )(x_flat, w_mat, b_col)

    # Metadata reshape + valid-region slice (drops wrapped-tap columns/rows).
    # TODO(synk): if this conv feeds another fused op, keep the padded
    # (Cout, H*W) slab and fold the valid-region handling into the consumer.
    return out_full.reshape(B, Cout, H, W)[:, :, :Ho, :Wo]


if __name__ == "__main__":
    key = jax.random.PRNGKey(0)
    kx, kw, kb = jax.random.split(key, 3)

    # Small shapes consistent with the module: batch=2, 3 input channels, 16x16.
    B, Cin, H, W = 2, 3, 16, 16
    Cout, KH, KW = 6, 3, 3

    x = jax.random.normal(kx, (B, Cin, H, W), dtype=jnp.float32)
    # Deterministic synthetic parameters (PyTorch-ish uniform init range).
    fan_in = Cin * KH * KW
    bound = 1.0 / (fan_in ** 0.5)
    weight = jax.random.uniform(kw, (Cout, Cin, KH, KW),
                                minval=-bound, maxval=bound, dtype=jnp.float32)
    bias = jax.random.uniform(kb, (Cout,),
                              minval=-bound, maxval=bound, dtype=jnp.float32)

    out = cnn_forward(x, weight, bias)
    out = jax.block_until_ready(out)
    assert out.shape == (B, Cout, H - 2, W - 2), out.shape

    # Pure-JAX reference check (conv + leaky_relu).
    ref = jax.lax.conv_general_dilated(
        x, weight, window_strides=(1, 1), padding="VALID",
        dimension_numbers=("NCHW", "OIHW", "NCHW"))
    ref = ref + bias.reshape(1, Cout, 1, 1)
    ref = jnp.where(ref > 0, ref, NEG_SLOPE * ref)
    assert jnp.allclose(out, ref, atol=1e-4, rtol=1e-4), \
        float(jnp.max(jnp.abs(out - ref)))

    print("KERNEL_OK")
</pallas_src>

<mosaic_0001>
module attributes {stable_mosaic.version = 11 : i64} {
  func.func @kernel(%arg0: memref<6x256xf32, #tpu.memory_space<vmem>>, %arg1: memref<6x27xf32, #tpu.memory_space<vmem>>, %arg2: memref<6x1xf32, #tpu.memory_space<vmem>>, %arg3: memref<2x6x256xf32, #tpu.memory_space<vmem>>) attributes {dimension_semantics = [], scalar_prefetch = 0 : i64, scratch_operands = 0 : i64, tpu.core_type = #tpu.core_type<tc>} {
    %c0 = arith.constant 0 : index
    %c0_0 = arith.constant 0 : index
    %0 = vector.load %arg0[%c0, %c0_0] : memref<6x256xf32, #tpu.memory_space<vmem>>, vector<6x256xf32>
    %c0_1 = arith.constant 0 : index
    %c0_2 = arith.constant 0 : index
    %1 = vector.load %arg1[%c0_1, %c0_2] : memref<6x27xf32, #tpu.memory_space<vmem>>, vector<6x27xf32>
    %c0_3 = arith.constant 0 : index
    %c0_4 = arith.constant 0 : index
    %2 = vector.load %arg2[%c0_3, %c0_4] : memref<6x1xf32, #tpu.memory_space<vmem>>, vector<6x1xf32>
    %c255_i32 = arith.constant 255 : i32
    %3 = tpu.dynamic_rotate %0 by %c255_i32 dim 1 : vector<6x256xf32>, i32 -> vector<6x256xf32>
    %c254_i32 = arith.constant 254 : i32
    %4 = tpu.dynamic_rotate %0 by %c254_i32 dim 1 : vector<6x256xf32>, i32 -> vector<6x256xf32>
    %c240_i32 = arith.constant 240 : i32
    %5 = tpu.dynamic_rotate %0 by %c240_i32 dim 1 : vector<6x256xf32>, i32 -> vector<6x256xf32>
    %c239_i32 = arith.constant 239 : i32
    %6 = tpu.dynamic_rotate %0 by %c239_i32 dim 1 : vector<6x256xf32>, i32 -> vector<6x256xf32>
    %c238_i32 = arith.constant 238 : i32
    %7 = tpu.dynamic_rotate %0 by %c238_i32 dim 1 : vector<6x256xf32>, i32 -> vector<6x256xf32>
    %c224_i32 = arith.constant 224 : i32
    %8 = tpu.dynamic_rotate %0 by %c224_i32 dim 1 : vector<6x256xf32>, i32 -> vector<6x256xf32>
    %c223_i32 = arith.constant 223 : i32
    %9 = tpu.dynamic_rotate %0 by %c223_i32 dim 1 : vector<6x256xf32>, i32 -> vector<6x256xf32>
    %c222_i32 = arith.constant 222 : i32
    %10 = tpu.dynamic_rotate %0 by %c222_i32 dim 1 : vector<6x256xf32>, i32 -> vector<6x256xf32>
    %11 = vector.extract_strided_slice %1 {offsets = [0, 0], sizes = [6, 1], strides = [1, 1]} : vector<6x27xf32> to vector<6x1xf32>
    %12 = vector.extract_strided_slice %1 {offsets = [0, 9], sizes = [6, 1], strides = [1, 1]} : vector<6x27xf32> to vector<6x1xf32>
    %13 = vector.extract_strided_slice %1 {offsets = [0, 18], sizes = [6, 1], strides = [1, 1]} : vector<6x27xf32> to vector<6x1xf32>
    %14 = vector.extract_strided_slice %1 {offsets = [0, 1], sizes = [6, 1], strides = [1, 1]} : vector<6x27xf32> to vector<6x1xf32>
    %15 = vector.extract_strided_slice %1 {offsets = [0, 10], sizes = [6, 1], strides = [1, 1]} : vector<6x27xf32> to vector<6x1xf32>
    %16 = vector.extract_strided_slice %1 {offsets = [0, 19], sizes = [6, 1], strides = [1, 1]} : vector<6x27xf32> to vector<6x1xf32>
    %17 = vector.extract_strided_slice %1 {offsets = [0, 2], sizes = [6, 1], strides = [1, 1]} : vector<6x27xf32> to vector<6x1xf32>
    %18 = vector.extract_strided_slice %1 {offsets = [0, 11], sizes = [6, 1], strides = [1, 1]} : vector<6x27xf32> to vector<6x1xf32>
    %19 = vector.extract_strided_slice %1 {offsets = [0, 20], sizes = [6, 1], strides = [1, 1]} : vector<6x27xf32> to vector<6x1xf32>
    %20 = vector.extract_strided_slice %1 {offsets = [0, 3], sizes = [6, 1], strides = [1, 1]} : vector<6x27xf32> to vector<6x1xf32>
    %21 = vector.extract_strided_slice %1 {offsets = [0, 12], sizes = [6, 1], strides = [1, 1]} : vector<6x27xf32> to vector<6x1xf32>
    %22 = vector.extract_strided_slice %1 {offsets = [0, 21], sizes = [6, 1], strides = [1, 1]} : vector<6x27xf32> to vector<6x1xf32>
    %23 = vector.extract_strided_slice %1 {offsets = [0, 4], sizes = [6, 1], strides = [1, 1]} : vector<6x27xf32> to vector<6x1xf32>
    %24 = vector.extract_strided_slice %1 {offsets = [0, 13], sizes = [6, 1], strides = [1, 1]} : vector<6x27xf32> to vector<6x1xf32>
    %25 = vector.extract_strided_slice %1 {offsets = [0, 22], sizes = [6, 1], strides = [1, 1]} : vector<6x27xf32> to vector<6x1xf32>
    %26 = vector.extract_strided_slice %1 {offsets = [0, 5], sizes = [6, 1], strides = [1, 1]} : vector<6x27xf32> to vector<6x1xf32>
    %27 = vector.extract_strided_slice %1 {offsets = [0, 14], sizes = [6, 1], strides = [1, 1]} : vector<6x27xf32> to vector<6x1xf32>
    %28 = vector.extract_strided_slice %1 {offsets = [0, 23], sizes = [6, 1], strides = [1, 1]} : vector<6x27xf32> to vector<6x1xf32>
    %29 = vector.extract_strided_slice %1 {offsets = [0, 6], sizes = [6, 1], strides = [1, 1]} : vector<6x27xf32> to vector<6x1xf32>
    %30 = vector.extract_strided_slice %1 {offsets = [0, 15], sizes = [6, 1], strides = [1, 1]} : vector<6x27xf32> to vector<6x1xf32>
    %31 = vector.extract_strided_slice %1 {offsets = [0, 24], sizes = [6, 1], strides = [1, 1]} : vector<6x27xf32> to vector<6x1xf32>
    %32 = vector.extract_strided_slice %1 {offsets = [0, 7], sizes = [6, 1], strides = [1, 1]} : vector<6x27xf32> to vector<6x1xf32>
    %33 = vector.extract_strided_slice %1 {offsets = [0, 16], sizes = [6, 1], strides = [1, 1]} : vector<6x27xf32> to vector<6x1xf32>
    %34 = vector.extract_strided_slice %1 {offsets = [0, 25], sizes = [6, 1], strides = [1, 1]} : vector<6x27xf32> to vector<6x1xf32>
    %35 = vector.extract_strided_slice %1 {offsets = [0, 8], sizes = [6, 1], strides = [1, 1]} : vector<6x27xf32> to vector<6x1xf32>
    %36 = vector.extract_strided_slice %1 {offsets = [0, 17], sizes = [6, 1], strides = [1, 1]} : vector<6x27xf32> to vector<6x1xf32>
    %37 = vector.extract_strided_slice %1 {offsets = [0, 26], sizes = [6, 1], strides = [1, 1]} : vector<6x27xf32> to vector<6x1xf32>
    %cst = arith.constant 0.000000e+00 : f32
    %38 = vector.broadcast %cst : f32 to vector<6x256xf32>
    %39 = vector.extract_strided_slice %0 {offsets = [0, 0], sizes = [1, 256], strides = [1, 1]} : vector<6x256xf32> to vector<1x256xf32>
    %40 = vector.broadcast %11 : vector<6x1xf32> to vector<6x256xf32>
    %41 = vector.broadcast %39 : vector<1x256xf32> to vector<6x256xf32>
    %42 = arith.mulf %40, %41 : vector<6x256xf32>
    %43 = arith.addf %38, %42 : vector<6x256xf32>
    %44 = vector.extract_strided_slice %0 {offsets = [1, 0], sizes = [1, 256], strides = [1, 1]} : vector<6x256xf32> to vector<1x256xf32>
    %45 = vector.broadcast %12 : vector<6x1xf32> to vector<6x256xf32>
    %46 = vector.broadcast %44 : vector<1x256xf32> to vector<6x256xf32>
    %47 = arith.mulf %45, %46 : vector<6x256xf32>
    %48 = arith.addf %43, %47 : vector<6x256xf32>
    %49 = vector.extract_strided_slice %0 {offsets = [2, 0], sizes = [1, 256], strides = [1, 1]} : vector<6x256xf32> to vector<1x256xf32>
    %50 = vector.broadcast %13 : vector<6x1xf32> to vector<6x256xf32>
    %51 = vector.broadcast %49 : vector<1x256xf32> to vector<6x256xf32>
    %52 = arith.mulf %50, %51 : vector<6x256xf32>
    %53 = arith.addf %48, %52 : vector<6x256xf32>
    %54 = vector.extract_strided_slice %3 {offsets = [0, 0], sizes = [1, 256], strides = [1, 1]} : vector<6x256xf32> to vector<1x256xf32>
    %55 = vector.broadcast %14 : vector<6x1xf32> to vector<6x256xf32>
    %56 = vector.broadcast %54 : vector<1x256xf32> to vector<6x256xf32>
    %57 = arith.mulf %55, %56 : vector<6x256xf32>
    %58 = arith.addf %53, %57 : vector<6x256xf32>
    %59 = vector.extract_strided_slice %3 {offsets = [1, 0], sizes = [1, 256], strides = [1, 1]} : vector<6x256xf32> to vector<1x256xf32>
    %60 = vector.broadcast %15 : vector<6x1xf32> to vector<6x256xf32>
    %61 = vector.broadcast %59 : vector<1x256xf32> to vector<6x256xf32>
    %62 = arith.mulf %60, %61 : vector<6x256xf32>
    %63 = arith.addf %58, %62 : vector<6x256xf32>
    %64 = vector.extract_strided_slice %3 {offsets = [2, 0], sizes = [1, 256], strides = [1, 1]} : vector<6x256xf32> to vector<1x256xf32>
    %65 = vector.broadcast %16 : vector<6x1xf32> to vector<6x256xf32>
    %66 = vector.broadcast %64 : vector<1x256xf32> to vector<6x256xf32>
    %67 = arith.mulf %65, %66 : vector<6x256xf32>
    %68 = arith.addf %63, %67 : vector<6x256xf32>
    %69 = vector.extract_strided_slice %4 {offsets = [0, 0], sizes = [1, 256], strides = [1, 1]} : vector<6x256xf32> to vector<1x256xf32>
    %70 = vector.broadcast %17 : vector<6x1xf32> to vector<6x256xf32>
    %71 = vector.broadcast %69 : vector<1x256xf32> to vector<6x256xf32>
    %72 = arith.mulf %70, %71 : vector<6x256xf32>
    %73 = arith.addf %68, %72 : vector<6x256xf32>
    %74 = vector.extract_strided_slice %4 {offsets = [1, 0], sizes = [1, 256], strides = [1, 1]} : vector<6x256xf32> to vector<1x256xf32>
    %75 = vector.broadcast %18 : vector<6x1xf32> to vector<6x256xf32>
    %76 = vector.broadcast %74 : vector<1x256xf32> to vector<6x256xf32>
    %77 = arith.mulf %75, %76 : vector<6x256xf32>
    %78 = arith.addf %73, %77 : vector<6x256xf32>
    %79 = vector.extract_strided_slice %4 {offsets = [2, 0], sizes = [1, 256], strides = [1, 1]} : vector<6x256xf32> to vector<1x256xf32>
    %80 = vector.broadcast %19 : vector<6x1xf32> to vector<6x256xf32>
    %81 = vector.broadcast %79 : vector<1x256xf32> to vector<6x256xf32>
    %82 = arith.mulf %80, %81 : vector<6x256xf32>
    %83 = arith.addf %78, %82 : vector<6x256xf32>
    %84 = vector.extract_strided_slice %5 {offsets = [0, 0], sizes = [1, 256], strides = [1, 1]} : vector<6x256xf32> to vector<1x256xf32>
    %85 = vector.broadcast %20 : vector<6x1xf32> to vector<6x256xf32>
    %86 = vector.broadcast %84 : vector<1x256xf32> to vector<6x256xf32>
    %87 = arith.mulf %85, %86 : vector<6x256xf32>
    %88 = arith.addf %83, %87 : vector<6x256xf32>
    %89 = vector.extract_strided_slice %5 {offsets = [1, 0], sizes = [1, 256], strides = [1, 1]} : vector<6x256xf32> to vector<1x256xf32>
    %90 = vector.broadcast %21 : vector<6x1xf32> to vector<6x256xf32>
    %91 = vector.broadcast %89 : vector<1x256xf32> to vector<6x256xf32>
    %92 = arith.mulf %90, %91 : vector<6x256xf32>
    %93 = arith.addf %88, %92 : vector<6x256xf32>
    %94 = vector.extract_strided_slice %5 {offsets = [2, 0], sizes = [1, 256], strides = [1, 1]} : vector<6x256xf32> to vector<1x256xf32>
    %95 = vector.broadcast %22 : vector<6x1xf32> to vector<6x256xf32>
    %96 = vector.broadcast %94 : vector<1x256xf32> to vector<6x256xf32>
    %97 = arith.mulf %95, %96 : vector<6x256xf32>
    %98 = arith.addf %93, %97 : vector<6x256xf32>
    %99 = vector.extract_strided_slice %6 {offsets = [0, 0], sizes = [1, 256], strides = [1, 1]} : vector<6x256xf32> to vector<1x256xf32>
    %100 = vector.broadcast %23 : vector<6x1xf32> to vector<6x256xf32>
    %101 = vector.broadcast %99 : vector<1x256xf32> to vector<6x256xf32>
    %102 = arith.mulf %100, %101 : vector<6x256xf32>
    %103 = arith.addf %98, %102 : vector<6x256xf32>
    %104 = vector.extract_strided_slice %6 {offsets = [1, 0], sizes = [1, 256], strides = [1, 1]} : vector<6x256xf32> to vector<1x256xf32>
    %105 = vector.broadcast %24 : vector<6x1xf32> to vector<6x256xf32>
    %106 = vector.broadcast %104 : vector<1x256xf32> to vector<6x256xf32>
    %107 = arith.mulf %105, %106 : vector<6x256xf32>
    %108 = arith.addf %103, %107 : vector<6x256xf32>
    %109 = vector.extract_strided_slice %6 {offsets = [2, 0], sizes = [1, 256], strides = [1, 1]} : vector<6x256xf32> to vector<1x256xf32>
    %110 = vector.broadcast %25 : vector<6x1xf32> to vector<6x256xf32>
    %111 = vector.broadcast %109 : vector<1x256xf32> to vector<6x256xf32>
    %112 = arith.mulf %110, %111 : vector<6x256xf32>
    %113 = arith.addf %108, %112 : vector<6x256xf32>
    %114 = vector.extract_strided_slice %7 {offsets = [0, 0], sizes = [1, 256], strides = [1, 1]} : vector<6x256xf32> to vector<1x256xf32>
    %115 = vector.broadcast %26 : vector<6x1xf32> to vector<6x256xf32>
    %116 = vector.broadcast %114 : vector<1x256xf32> to vector<6x256xf32>
    %117 = arith.mulf %115, %116 : vector<6x256xf32>
    %118 = arith.addf %113, %117 : vector<6x256xf32>
    %119 = vector.extract_strided_slice %7 {offsets = [1, 0], sizes = [1, 256], strides = [1, 1]} : vector<6x256xf32> to vector<1x256xf32>
    %120 = vector.broadcast %27 : vector<6x1xf32> to vector<6x256xf32>
    %121 = vector.broadcast %119 : vector<1x256xf32> to vector<6x256xf32>
    %122 = arith.mulf %120, %121 : vector<6x256xf32>
    %123 = arith.addf %118, %122 : vector<6x256xf32>
    %124 = vector.extract_strided_slice %7 {offsets = [2, 0], sizes = [1, 256], strides = [1, 1]} : vector<6x256xf32> to vector<1x256xf32>
    %125 = vector.broadcast %28 : vector<6x1xf32> to vector<6x256xf32>
    %126 = vector.broadcast %124 : vector<1x256xf32> to vector<6x256xf32>
    %127 = arith.mulf %125, %126 : vector<6x256xf32>
    %128 = arith.addf %123, %127 : vector<6x256xf32>
    %129 = vector.extract_strided_slice %8 {offsets = [0, 0], sizes = [1, 256], strides = [1, 1]} : vector<6x256xf32> to vector<1x256xf32>
    %130 = vector.broadcast %29 : vector<6x1xf32> to vector<6x256xf32>
    %131 = vector.broadcast %129 : vector<1x256xf32> to vector<6x256xf32>
    %132 = arith.mulf %130, %131 : vector<6x256xf32>
    %133 = arith.addf %128, %132 : vector<6x256xf32>
    %134 = vector.extract_strided_slice %8 {offsets = [1, 0], sizes = [1, 256], strides = [1, 1]} : vector<6x256xf32> to vector<1x256xf32>
    %135 = vector.broadcast %30 : vector<6x1xf32> to vector<6x256xf32>
    %136 = vector.broadcast %134 : vector<1x256xf32> to vector<6x256xf32>
    %137 = arith.mulf %135, %136 : vector<6x256xf32>
    %138 = arith.addf %133, %137 : vector<6x256xf32>
    %139 = vector.extract_strided_slice %8 {offsets = [2, 0], sizes = [1, 256], strides = [1, 1]} : vector<6x256xf32> to vector<1x256xf32>
    %140 = vector.broadcast %31 : vector<6x1xf32> to vector<6x256xf32>
    %141 = vector.broadcast %139 : vector<1x256xf32> to vector<6x256xf32>
    %142 = arith.mulf %140, %141 : vector<6x256xf32>
    %143 = arith.addf %138, %142 : vector<6x256xf32>
    %144 = vector.extract_strided_slice %9 {offsets = [0, 0], sizes = [1, 256], strides = [1, 1]} : vector<6x256xf32> to vector<1x256xf32>
    %145 = vector.broadcast %32 : vector<6x1xf32> to vector<6x256xf32>
    %146 = vector.broadcast %144 : vector<1x256xf32> to vector<6x256xf32>
    %147 = arith.mulf %145, %146 : vector<6x256xf32>
    %148 = arith.addf %143, %147 : vector<6x256xf32>
    %149 = vector.extract_strided_slice %9 {offsets = [1, 0], sizes = [1, 256], strides = [1, 1]} : vector<6x256xf32> to vector<1x256xf32>
    %150 = vector.broadcast %33 : vector<6x1xf32> to vector<6x256xf32>
    %151 = vector.broadcast %149 : vector<1x256xf32> to vector<6x256xf32>
    %152 = arith.mulf %150, %151 : vector<6x256xf32>
    %153 = arith.addf %148, %152 : vector<6x256xf32>
    %154 = vector.extract_strided_slice %9 {offsets = [2, 0], sizes = [1, 256], strides = [1, 1]} : vector<6x256xf32> to vector<1x256xf32>
    %155 = vector.broadcast %34 : vector<6x1xf32> to vector<6x256xf32>
    %156 = vector.broadcast %154 : vector<1x256xf32> to vector<6x256xf32>
    %157 = arith.mulf %155, %156 : vector<6x256xf32>
    %158 = arith.addf %153, %157 : vector<6x256xf32>
    %159 = vector.extract_strided_slice %10 {offsets = [0, 0], sizes = [1, 256], strides = [1, 1]} : vector<6x256xf32> to vector<1x256xf32>
    %160 = vector.broadcast %35 : vector<6x1xf32> to vector<6x256xf32>
    %161 = vector.broadcast %159 : vector<1x256xf32> to vector<6x256xf32>
    %162 = arith.mulf %160, %161 : vector<6x256xf32>
    %163 = arith.addf %158, %162 : vector<6x256xf32>
    %164 = vector.extract_strided_slice %10 {offsets = [1, 0], sizes = [1, 256], strides = [1, 1]} : vector<6x256xf32> to vector<1x256xf32>
    %165 = vector.broadcast %36 : vector<6x1xf32> to vector<6x256xf32>
    %166 = vector.broadcast %164 : vector<1x256xf32> to vector<6x256xf32>
    %167 = arith.mulf %165, %166 : vector<6x256xf32>
    %168 = arith.addf %163, %167 : vector<6x256xf32>
    %169 = vector.extract_strided_slice %10 {offsets = [2, 0], sizes = [1, 256], strides = [1, 1]} : vector<6x256xf32> to vector<1x256xf32>
    %170 = vector.broadcast %37 : vector<6x1xf32> to vector<6x256xf32>
    %171 = vector.broadcast %169 : vector<1x256xf32> to vector<6x256xf32>
    %172 = arith.mulf %170, %171 : vector<6x256xf32>
    %173 = arith.addf %168, %172 : vector<6x256xf32>
    %174 = vector.broadcast %2 : vector<6x1xf32> to vector<6x256xf32>
    %175 = arith.addf %173, %174 : vector<6x256xf32>
    %cst_5 = arith.constant 0.00999999977 : f32
    %176 = vector.broadcast %cst_5 : f32 to vector<6x256xf32>
    %177 = arith.mulf %176, %175 : vector<6x256xf32>
    %178 = arith.maximumf %175, %177 : vector<6x256xf32>
    %c0_6 = arith.constant 0 : index
    %c0_7 = arith.constant 0 : index
    %c0_8 = arith.constant 0 : index
    %179 = vector.load %arg3[%c0_6, %c0_7, %c0_8] : memref<2x6x256xf32, #tpu.memory_space<vmem>>, vector<1x6x256xf32>
    %180 = vector.shape_cast %179 : vector<1x6x256xf32> to vector<6x256xf32>
    %181 = vector.shape_cast %178 : vector<6x256xf32> to vector<1x6x256xf32>
    tpu.vector_store %arg3[%c0_6, %c0_7, %c0_8], %181 {strides = array<i32>} : memref<2x6x256xf32, #tpu.memory_space<vmem>>, vector<1x6x256xf32>,
    %cst_9 = arith.constant 0.000000e+00 : f32
    %182 = vector.broadcast %cst_9 : f32 to vector<6x256xf32>
    %183 = vector.extract_strided_slice %0 {offsets = [3, 0], sizes = [1, 256], strides = [1, 1]} : vector<6x256xf32> to vector<1x256xf32>
    %184 = vector.broadcast %11 : vector<6x1xf32> to vector<6x256xf32>
    %185 = vector.broadcast %183 : vector<1x256xf32> to vector<6x256xf32>
    %186 = arith.mulf %184, %185 : vector<6x256xf32>
    %187 = arith.addf %182, %186 : vector<6x256xf32>
    %188 = vector.extract_strided_slice %0 {offsets = [4, 0], sizes = [1, 256], strides = [1, 1]} : vector<6x256xf32> to vector<1x256xf32>
    %189 = vector.broadcast %12 : vector<6x1xf32> to vector<6x256xf32>
    %190 = vector.broadcast %188 : vector<1x256xf32> to vector<6x256xf32>
    %191 = arith.mulf %189, %190 : vector<6x256xf32>
    %192 = arith.addf %187, %191 : vector<6x256xf32>
    %193 = vector.extract_strided_slice %0 {offsets = [5, 0], sizes = [1, 256], strides = [1, 1]} : vector<6x256xf32> to vector<1x256xf32>
    %194 = vector.broadcast %13 : vector<6x1xf32> to vector<6x256xf32>
    %195 = vector.broadcast %193 : vector<1x256xf32> to vector<6x256xf32>
    %196 = arith.mulf %194, %195 : vector<6x256xf32>
    %197 = arith.addf %192, %196 : vector<6x256xf32>
    %198 = vector.extract_strided_slice %3 {offsets = [3, 0], sizes = [1, 256], strides = [1, 1]} : vector<6x256xf32> to vector<1x256xf32>
    %199 = vector.broadcast %14 : vector<6x1xf32> to vector<6x256xf32>
    %200 = vector.broadcast %198 : vector<1x256xf32> to vector<6x256xf32>
    %201 = arith.mulf %199, %200 : vector<6x256xf32>
    %202 = arith.addf %197, %201 : vector<6x256xf32>
    %203 = vector.extract_strided_slice %3 {offsets = [4, 0], sizes = [1, 256], strides = [1, 1]} : vector<6x256xf32> to vector<1x256xf32>
    %204 = vector.broadcast %15 : vector<6x1xf32> to vector<6x256xf32>
    %205 = vector.broadcast %203 : vector<1x256xf32> to vector<6x256xf32>
    %206 = arith.mulf %204, %205 : vector<6x256xf32>
    %207 = arith.addf %202, %206 : vector<6x256xf32>
    %208 = vector.extract_strided_slice %3 {offsets = [5, 0], sizes = [1, 256], strides = [1, 1]} : vector<6x256xf32> to vector<1x256xf32>
    %209 = vector.broadcast %16 : vector<6x1xf32> to vector<6x256xf32>
    %210 = vector.broadcast %208 : vector<1x256xf32> to vector<6x256xf32>
    %211 = arith.mulf %209, %210 : vector<6x256xf32>
    %212 = arith.addf %207, %211 : vector<6x256xf32>
    %213 = vector.extract_strided_slice %4 {offsets = [3, 0], sizes = [1, 256], strides = [1, 1]} : vector<6x256xf32> to vector<1x256xf32>
    %214 = vector.broadcast %17 : vector<6x1xf32> to vector<6x256xf32>
    %215 = vector.broadcast %213 : vector<1x256xf32> to vector<6x256xf32>
    %216 = arith.mulf %214, %215 : vector<6x256xf32>
    %217 = arith.addf %212, %216 : vector<6x256xf32>
    %218 = vector.extract_strided_slice %4 {offsets = [4, 0], sizes = [1, 256], strides = [1, 1]} : vector<6x256xf32> to vector<1x256xf32>
    %219 = vector.broadcast %18 : vector<6x1xf32> to vector<6x256xf32>
    %220 = vector.broadcast %218 : vector<1x256xf32> to vector<6x256xf32>
    %221 = arith.mulf %219, %220 : vector<6x256xf32>
    %222 = arith.addf %217, %221 : vector<6x256xf32>
    %223 = vector.extract_strided_slice %4 {offsets = [5, 0], sizes = [1, 256], strides = [1, 1]} : vector<6x256xf32> to vector<1x256xf32>
    %224 = vector.broadcast %19 : vector<6x1xf32> to vector<6x256xf32>
    %225 = vector.broadcast %223 : vector<1x256xf32> to vector<6x256xf32>
    %226 = arith.mulf %224, %225 : vector<6x256xf32>
    %227 = arith.addf %222, %226 : vector<6x256xf32>
    %228 = vector.extract_strided_slice %5 {offsets = [3, 0], sizes = [1, 256], strides = [1, 1]} : vector<6x256xf32> to vector<1x256xf32>
    %229 = vector.broadcast %20 : vector<6x1xf32> to vector<6x256xf32>
    %230 = vector.broadcast %228 : vector<1x256xf32> to vector<6x256xf32>
    %231 = arith.mulf %229, %230 : vector<6x256xf32>
    %232 = arith.addf %227, %231 : vector<6x256xf32>
    %233 = vector.extract_strided_slice %5 {offsets = [4, 0], sizes = [1, 256], strides = [1, 1]} : vector<6x256xf32> to vector<1x256xf32>
    %234 = vector.broadcast %21 : vector<6x1xf32> to vector<6x256xf32>
    %235 = vector.broadcast %233 : vector<1x256xf32> to vector<6x256xf32>
    %236 = arith.mulf %234, %235 : vector<6x256xf32>
    %237 = arith.addf %232, %236 : vector<6x256xf32>
    %238 = vector.extract_strided_slice %5 {offsets = [5, 0], sizes = [1, 256], strides = [1, 1]} : vector<6x256xf32> to vector<1x256xf32>
    %239 = vector.broadcast %22 : vector<6x1xf32> to vector<6x256xf32>
    %240 = vector.broadcast %238 : vector<1x256xf32> to vector<6x256xf32>
    %241 = arith.mulf %239, %240 : vector<6x256xf32>
    %242 = arith.addf %237, %241 : vector<6x256xf32>
    %243 = vector.extract_strided_slice %6 {offsets = [3, 0], sizes = [1, 256], strides = [1, 1]} : vector<6x256xf32> to vector<1x256xf32>
    %244 = vector.broadcast %23 : vector<6x1xf32> to vector<6x256xf32>
    %245 = vector.broadcast %243 : vector<1x256xf32> to vector<6x256xf32>
    %246 = arith.mulf %244, %245 : vector<6x256xf32>
    %247 = arith.addf %242, %246 : vector<6x256xf32>
    %248 = vector.extract_strided_slice %6 {offsets = [4, 0], sizes = [1, 256], strides = [1, 1]} : vector<6x256xf32> to vector<1x256xf32>
    %249 = vector.broadcast %24 : vector<6x1xf32> to vector<6x256xf32>
    %250 = vector.broadcast %248 : vector<1x256xf32> to vector<6x256xf32>
    %251 = arith.mulf %249, %250 : vector<6x256xf32>
    %252 = arith.addf %247, %251 : vector<6x256xf32>
    %253 = vector.extract_strided_slice %6 {offsets = [5, 0], sizes = [1, 256], strides = [1, 1]} : vector<6x256xf32> to vector<1x256xf32>
    %254 = vector.broadcast %25 : vector<6x1xf32> to vector<6x256xf32>
    %255 = vector.broadcast %253 : vector<1x256xf32> to vector<6x256xf32>
    %256 = arith.mulf %254, %255 : vector<6x256xf32>
    %257 = arith.addf %252, %256 : vector<6x256xf32>
    %258 = vector.extract_strided_slice %7 {offsets = [3, 0], sizes = [1, 256], strides = [1, 1]} : vector<6x256xf32> to vector<1x256xf32>
    %259 = vector.broadcast %26 : vector<6x1xf32> to vector<6x256xf32>
    %260 = vector.broadcast %258 : vector<1x256xf32> to vector<6x256xf32>
    %261 = arith.mulf %259, %260 : vector<6x256xf32>
    %262 = arith.addf %257, %261 : vector<6x256xf32>
    %263 = vector.extract_strided_slice %7 {offsets = [4, 0], sizes = [1, 256], strides = [1, 1]} : vector<6x256xf32> to vector<1x256xf32>
    %264 = vector.broadcast %27 : vector<6x1xf32> to vector<6x256xf32>
    %265 = vector.broadcast %263 : vector<1x256xf32> to vector<6x256xf32>
    %266 = arith.mulf %264, %265 : vector<6x256xf32>
    %267 = arith.addf %262, %266 : vector<6x256xf32>
    %268 = vector.extract_strided_slice %7 {offsets = [5, 0], sizes = [1, 256], strides = [1, 1]} : vector<6x256xf32> to vector<1x256xf32>
    %269 = vector.broadcast %28 : vector<6x1xf32> to vector<6x256xf32>
    %270 = vector.broadcast %268 : vector<1x256xf32> to vector<6x256xf32>
    %271 = arith.mulf %269, %270 : vector<6x256xf32>
    %272 = arith.addf %267, %271 : vector<6x256xf32>
    %273 = vector.extract_strided_slice %8 {offsets = [3, 0], sizes = [1, 256], strides = [1, 1]} : vector<6x256xf32> to vector<1x256xf32>
    %274 = vector.broadcast %29 : vector<6x1xf32> to vector<6x256xf32>
    %275 = vector.broadcast %273 : vector<1x256xf32> to vector<6x256xf32>
    %276 = arith.mulf %274, %275 : vector<6x256xf32>
    %277 = arith.addf %272, %276 : vector<6x256xf32>
    %278 = vector.extract_strided_slice %8 {offsets = [4, 0], sizes = [1, 256], strides = [1, 1]} : vector<6x256xf32> to vector<1x256xf32>
    %279 = vector.broadcast %30 : vector<6x1xf32> to vector<6x256xf32>
    %280 = vector.broadcast %278 : vector<1x256xf32> to vector<6x256xf32>
    %281 = arith.mulf %279, %280 : vector<6x256xf32>
    %282 = arith.addf %277, %281 : vector<6x256xf32>
    %283 = vector.extract_strided_slice %8 {offsets = [5, 0], sizes = [1, 256], strides = [1, 1]} : vector<6x256xf32> to vector<1x256xf32>
    %284 = vector.broadcast %31 : vector<6x1xf32> to vector<6x256xf32>
    %285 = vector.broadcast %283 : vector<1x256xf32> to vector<6x256xf32>
    %286 = arith.mulf %284, %285 : vector<6x256xf32>
    %287 = arith.addf %282, %286 : vector<6x256xf32>
    %288 = vector.extract_strided_slice %9 {offsets = [3, 0], sizes = [1, 256], strides = [1, 1]} : vector<6x256xf32> to vector<1x256xf32>
    %289 = vector.broadcast %32 : vector<6x1xf32> to vector<6x256xf32>
    %290 = vector.broadcast %288 : vector<1x256xf32> to vector<6x256xf32>
    %291 = arith.mulf %289, %290 : vector<6x256xf32>
    %292 = arith.addf %287, %291 : vector<6x256xf32>
    %293 = vector.extract_strided_slice %9 {offsets = [4, 0], sizes = [1, 256], strides = [1, 1]} : vector<6x256xf32> to vector<1x256xf32>
    %294 = vector.broadcast %33 : vector<6x1xf32> to vector<6x256xf32>
    %295 = vector.broadcast %293 : vector<1x256xf32> to vector<6x256xf32>
    %296 = arith.mulf %294, %295 : vector<6x256xf32>
    %297 = arith.addf %292, %296 : vector<6x256xf32>
    %298 = vector.extract_strided_slice %9 {offsets = [5, 0], sizes = [1, 256], strides = [1, 1]} : vector<6x256xf32> to vector<1x256xf32>
    %299 = vector.broadcast %34 : vector<6x1xf32> to vector<6x256xf32>
    %300 = vector.broadcast %298 : vector<1x256xf32> to vector<6x256xf32>
    %301 = arith.mulf %299, %300 : vector<6x256xf32>
    %302 = arith.addf %297, %301 : vector<6x256xf32>
    %303 = vector.extract_strided_slice %10 {offsets = [3, 0], sizes = [1, 256], strides = [1, 1]} : vector<6x256xf32> to vector<1x256xf32>
    %304 = vector.broadcast %35 : vector<6x1xf32> to vector<6x256xf32>
    %305 = vector.broadcast %303 : vector<1x256xf32> to vector<6x256xf32>
    %306 = arith.mulf %304, %305 : vector<6x256xf32>
    %307 = arith.addf %302, %306 : vector<6x256xf32>
    %308 = vector.extract_strided_slice %10 {offsets = [4, 0], sizes = [1, 256], strides = [1, 1]} : vector<6x256xf32> to vector<1x256xf32>
    %309 = vector.broadcast %36 : vector<6x1xf32> to vector<6x256xf32>
    %310 = vector.broadcast %308 : vector<1x256xf32> to vector<6x256xf32>
    %311 = arith.mulf %309, %310 : vector<6x256xf32>
    %312 = arith.addf %307, %311 : vector<6x256xf32>
    %313 = vector.extract_strided_slice %10 {offsets = [5, 0], sizes = [1, 256], strides = [1, 1]} : vector<6x256xf32> to vector<1x256xf32>
    %314 = vector.broadcast %37 : vector<6x1xf32> to vector<6x256xf32>
    %315 = vector.broadcast %313 : vector<1x256xf32> to vector<6x256xf32>
    %316 = arith.mulf %314, %315 : vector<6x256xf32>
    %317 = arith.addf %312, %316 : vector<6x256xf32>
    %318 = vector.broadcast %2 : vector<6x1xf32> to vector<6x256xf32>
    %319 = arith.addf %317, %318 : vector<6x256xf32>
    %cst_10 = arith.constant 0.00999999977 : f32
    %320 = vector.broadcast %cst_10 : f32 to vector<6x256xf32>
    %321 = arith.mulf %320, %319 : vector<6x256xf32>
    %322 = arith.maximumf %319, %321 : vector<6x256xf32>
    %c1 = arith.constant 1 : index
    %c0_11 = arith.constant 0 : index
    %c0_12 = arith.constant 0 : index
    %323 = vector.load %arg3[%c1, %c0_11, %c0_12] : memref<2x6x256xf32, #tpu.memory_space<vmem>>, vector<1x6x256xf32>
    %324 = vector.shape_cast %323 : vector<1x6x256xf32> to vector<6x256xf32>
    %325 = vector.shape_cast %322 : vector<6x256xf32> to vector<1x6x256xf32>
    tpu.vector_store %arg3[%c1, %c0_11, %c0_12], %325 {strides = array<i32>} : memref<2x6x256xf32, #tpu.memory_space<vmem>>, vector<1x6x256xf32>,
    return
  }
}

</mosaic_0001>

<llo_original>
// kernel: tpu_custom_call.1
$region0: #{tpu_custom_call.1}
  #allocation0 [shape = 'u32[]', space=smem, size = 0x4, offset = 0x4, fixed_abs, tag = 'smem constant byte address 0x4 - core index']
  #allocation1 [shape = 'u32[144,128]{1,0:T(1,128)}', space=vmem, size = 0x12000, scoped, tag = 'internal scratch']
  %s0 = inlined_call_operand.hbm [shape: f32[6,256], index: 0, kind: input, shape index: {}]
  %s1 = inlined_call_operand.vmem [shape: f32[6,27], index: 1, kind: input, shape index: {}]
  %s2 = inlined_call_operand.vmem [shape: f32[6,1], index: 2, kind: input, shape index: {}]
  %s3 = inlined_call_operand.vmem [shape: f32[2,6,256], index: 3, kind: output, shape index: {}]
  %s4 = sld [smem:[#allocation0]]
  $region26: #{tpu_custom_call.1} parent=0
    _
  %s6 = ssub.s32 1, %s4
  %s7 = scalar_select 0, %s6, %s4
  $region1: #{tpu_custom_call.1} parent=0
    #allocation2 [shape = 'u8[8192]{0}', space=vmem, size = 0x2000, scoped, tag = 'input window, operand 0, single buffered']
    #allocation3 [shape = 's32[1]{0}', space=sflag, size = 0x4, scoped, tag = 'scoped memory for tpu_custom_call.1']
    %8 = vsyncpa [#allocation3], 0
    // Predicated region
    $region2: #{tpu_custom_call.1} parent=1 // pred_check
      _
    $region3: #{tpu_custom_call.1} parent=1 // pred_check_branch
      %10 = sbr.rel (0) target = $region5
    $region4: #{tpu_custom_call.1} parent=1 // pred_region
      %s12 = ssub.s32 256, 256
      %13 = vsyncadd [#allocation3], %s12
      %s15 = sshll.u32 [#allocation2], 4
      %s16 = int_to_ptr.vmem [resolvable:$true] %s15
      %18 = dma.hbm_to_vmem [thread:$0]  %s0, 256, %s16, [#allocation3]
    $region5: #{tpu_custom_call.1} parent=1 // pred_fallthru
      _
    // Predicated region
    $region6: #{tpu_custom_call.1} parent=1 // pred_check
      _
    $region7: #{tpu_custom_call.1} parent=1 // pred_check_branch
      %20 = sbr.rel (0) target = $region9
    $region8: #{tpu_custom_call.1} parent=1 // pred_region
      _
    $region9: #{tpu_custom_call.1} parent=1 // pred_fallthru
      _
    // Predicated region
    $region10: #{tpu_custom_call.1} parent=1 // pred_check
      _
    $region11: #{tpu_custom_call.1} parent=1 // pred_check_branch
      %22 = sbr.rel (0) target = $region13
    $region12: #{tpu_custom_call.1} parent=1 // pred_region
      _
    $region13: #{tpu_custom_call.1} parent=1 // pred_fallthru
      _
    // Predicated region
    $region14: #{tpu_custom_call.1} parent=1 // pred_check
      _
    $region15: #{tpu_custom_call.1} parent=1 // pred_check_branch
      %24 = sbr.rel (0) target = $region17
    $region16: #{tpu_custom_call.1} parent=1 // pred_region
      %25 = dma.done [#allocation3], 256
    $region17: #{tpu_custom_call.1} parent=1 // pred_fallthru
      _
    %v26 = vld [vmem:[#allocation2] sm:$0x3f]
    %v27 = vld [vmem:[#allocation2 + $0x8] sm:$0x3f]
    %v28 = vld [vmem:[%s1] sm:$0x3f]
    %v29 = vld [vmem:[%s2] sm:$0x3f]
    %30 = vrot.lane.b32.xlu0 %v26, 127
    %v31 = vpop.permute.xlu0 %30
    %32 = vrot.lane.b32.xlu0 %v27, 127
    %v33 = vpop.permute.xlu0 %32
    %v34 = vlaneseq
    %v35 = vand.u32 %v34, 127
    %vm36 = vcmp.lt.s32.totalorder %v35, 127
    %v37 = vsel %vm36, %v31, %v33
    %v38 = vsel %vm36, %v33, %v31
    %39 = vrot.lane.b32.xlu0 %v26, 126
    %v40 = vpop.permute.xlu0 %39
    %41 = vrot.lane.b32.xlu0 %v27, 126
    %v42 = vpop.permute.xlu0 %41
    %vm43 = vcmp.lt.s32.totalorder %v35, 126
    %v44 = vsel %vm43, %v40, %v42
    %v45 = vsel %vm43, %v42, %v40
    %46 = vrot.lane.b32.xlu0 %v26, 112
    %v47 = vpop.permute.xlu0 %46
    %48 = vrot.lane.b32.xlu0 %v27, 112
    %v49 = vpop.permute.xlu0 %48
    %vm50 = vcmp.lt.s32.totalorder %v35, 112
    %v51 = vsel %vm50, %v47, %v49
    %v52 = vsel %vm50, %v49, %v47
    %53 = vrot.lane.b32.xlu0 %v26, 111
    %v54 = vpop.permute.xlu0 %53
    %55 = vrot.lane.b32.xlu0 %v27, 111
    %v56 = vpop.permute.xlu0 %55
    %vm57 = vcmp.lt.s32.totalorder %v35, 111
    %v58 = vsel %vm57, %v54, %v56
    %v59 = vsel %vm57, %v56, %v54
    %60 = vrot.lane.b32.xlu0 %v26, 110
    %v61 = vpop.permute.xlu0 %60
    %62 = vrot.lane.b32.xlu0 %v27, 110
    %v63 = vpop.permute.xlu0 %62
    %vm64 = vcmp.lt.s32.totalorder %v35, 110
    %v65 = vsel %vm64, %v61, %v63
    %v66 = vsel %vm64, %v63, %v61
    %67 = vrot.lane.b32.xlu0 %v26, 96
    %v68 = vpop.permute.xlu0 %67
    %69 = vrot.lane.b32.xlu0 %v27, 96
    %v70 = vpop.permute.xlu0 %69
    %vm71 = vcmp.lt.s32.totalorder %v35, 96
    %v72 = vsel %vm71, %v68, %v70
    %v73 = vsel %vm71, %v70, %v68
    %74 = vrot.lane.b32.xlu0 %v26, 95
    %v75 = vpop.permute.xlu0 %74
    %76 = vrot.lane.b32.xlu0 %v27, 95
    %v77 = vpop.permute.xlu0 %76
    %vm78 = vcmp.lt.s32.totalorder %v35, 95
    %v79 = vsel %vm78, %v75, %v77
    %v80 = vsel %vm78, %v77, %v75
    %81 = vrot.lane.b32.xlu0 %v26, 94
    %v82 = vpop.permute.xlu0 %81
    %83 = vrot.lane.b32.xlu0 %v27, 94
    %v84 = vpop.permute.xlu0 %83
    %vm85 = vcmp.lt.s32.totalorder %v35, 94
    %v86 = vsel %vm85, %v82, %v84
    %v87 = vsel %vm85, %v84, %v82
    %89 = vset.pattern.permute.xlu0 0
    %90 = vperm.xlu0 %89, %v28
    %v91 = vpop.permute.xlu0 %90
    %v93 = vlaneseq
    %v94 = vshrl.u32 %v93, 7
    %v95 = vsub.s32 0, %v94
    %v96 = vrot.slane %v26, %v95
    %v97 = vlaneseq
    %v98 = vshrl.u32 %v97, 7
    %v99 = vsub.s32 0, %v98
    %v100 = vrot.slane %v27, %v99
    %v101 = vmul.f32 %v91, %v96
    %v102 = vmul.f32 %v91, %v100
    %v103 = vadd.f32 %v101, 0.0
    %v104 = vadd.f32 %v102, 0.0
    %105 = vset.pattern.permute.xlu0 9
    %106 = vperm.xlu0 %105, %v28
    %v107 = vpop.permute.xlu0 %106
    %v109 = vlaneseq
    %v110 = vshrl.u32 %v109, 7
    %v111 = vsub.s32 1, %v110
    %v112 = vrot.slane %v26, %v111
    %v113 = vlaneseq
    %v114 = vshrl.u32 %v113, 7
    %v115 = vsub.s32 1, %v114
    %v116 = vrot.slane %v27, %v115
    %v117 = vmul.f32 %v107, %v112
    %v118 = vmul.f32 %v107, %v116
    %v119 = vadd.f32 %v103, %v117
    %v120 = vadd.f32 %v104, %v118
    %121 = vset.pattern.permute.xlu0 18
    %122 = vperm.xlu0 %121, %v28
    %v123 = vpop.permute.xlu0 %122
    %v125 = vlaneseq
    %v126 = vshrl.u32 %v125, 7
    %v127 = vsub.s32 2, %v126
    %v128 = vrot.slane %v26, %v127
    %v129 = vlaneseq
    %v130 = vshrl.u32 %v129, 7
    %v131 = vsub.s32 2, %v130
    %v132 = vrot.slane %v27, %v131
    %v133 = vmul.f32 %v123, %v128
    %v134 = vmul.f32 %v123, %v132
    %v135 = vadd.f32 %v119, %v133
    %v136 = vadd.f32 %v120, %v134
    %137 = vset.pattern.permute.xlu0 1
    %138 = vperm.xlu0 %137, %v28
    %v139 = vpop.permute.xlu0 %138
    %v141 = vlaneseq
    %v142 = vshrl.u32 %v141, 7
    %v143 = vsub.s32 0, %v142
    %v144 = vrot.slane %v37, %v143
    %v145 = vlaneseq
    %v146 = vshrl.u32 %v145, 7
    %v147 = vsub.s32 0, %v146
    %v148 = vrot.slane %v38, %v147
    %v149 = vmul.f32 %v139, %v144
    %v150 = vmul.f32 %v139, %v148
    %v151 = vadd.f32 %v135, %v149
    %v152 = vadd.f32 %v136, %v150
    %153 = vset.pattern.permute.xlu0 10
    %154 = vperm.xlu0 %153, %v28
    %v155 = vpop.permute.xlu0 %154
    %v157 = vlaneseq
    %v158 = vshrl.u32 %v157, 7
    %v159 = vsub.s32 1, %v158
    %v160 = vrot.slane %v37, %v159
    %v161 = vlaneseq
    %v162 = vshrl.u32 %v161, 7
    %v163 = vsub.s32 1, %v162
    %v164 = vrot.slane %v38, %v163
    %v165 = vmul.f32 %v155, %v160
    %v166 = vmul.f32 %v155, %v164
    %v167 = vadd.f32 %v151, %v165
    %v168 = vadd.f32 %v152, %v166
    %169 = vset.pattern.permute.xlu0 19
    %170 = vperm.xlu0 %169, %v28
    %v171 = vpop.permute.xlu0 %170
    %v173 = vlaneseq
    %v174 = vshrl.u32 %v173, 7
    %v175 = vsub.s32 2, %v174
    %v176 = vrot.slane %v37, %v175
    %v177 = vlaneseq
    %v178 = vshrl.u32 %v177, 7
    %v179 = vsub.s32 2, %v178
    %v180 = vrot.slane %v38, %v179
    %v181 = vmul.f32 %v171, %v176
    %v182 = vmul.f32 %v171, %v180
    %v183 = vadd.f32 %v167, %v181
    %v184 = vadd.f32 %v168, %v182
    %185 = vset.pattern.permute.xlu0 2
    %186 = vperm.xlu0 %185, %v28
    %v187 = vpop.permute.xlu0 %186
    %v189 = vlaneseq
    %v190 = vshrl.u32 %v189, 7
    %v191 = vsub.s32 0, %v190
    %v192 = vrot.slane %v44, %v191
    %v193 = vlaneseq
    %v194 = vshrl.u32 %v193, 7
    %v195 = vsub.s32 0, %v194
    %v196 = vrot.slane %v45, %v195
    %v197 = vmul.f32 %v187, %v192
    %v198 = vmul.f32 %v187, %v196
    %v199 = vadd.f32 %v183, %v197
    %v200 = vadd.f32 %v184, %v198
    %201 = vset.pattern.permute.xlu0 11
    %202 = vperm.xlu0 %201, %v28
    %v203 = vpop.permute.xlu0 %202
    %v205 = vlaneseq
    %v206 = vshrl.u32 %v205, 7
    %v207 = vsub.s32 1, %v206
    %v208 = vrot.slane %v44, %v207
    %v209 = vlaneseq
    %v210 = vshrl.u32 %v209, 7
    %v211 = vsub.s32 1, %v210
    %v212 = vrot.slane %v45, %v211
    %v213 = vmul.f32 %v203, %v208
    %v214 = vmul.f32 %v203, %v212
    %v215 = vadd.f32 %v199, %v213
    %v216 = vadd.f32 %v200, %v214
    %217 = vset.pattern.permute.xlu0 20
    %218 = vperm.xlu0 %217, %v28
    %v219 = vpop.permute.xlu0 %218
    %v221 = vlaneseq
    %v222 = vshrl.u32 %v221, 7
    %v223 = vsub.s32 2, %v222
    %v224 = vrot.slane %v44, %v223
    %v225 = vlaneseq
    %v226 = vshrl.u32 %v225, 7
    %v227 = vsub.s32 2, %v226
    %v228 = vrot.slane %v45, %v227
    %v229 = vmul.f32 %v219, %v224
    %v230 = vmul.f32 %v219, %v228
    %v231 = vadd.f32 %v215, %v229
    %v232 = vadd.f32 %v216, %v230
    %233 = vset.pattern.permute.xlu0 3
    %234 = vperm.xlu0 %233, %v28
    %v235 = vpop.permute.xlu0 %234
    %v237 = vlaneseq
    %v238 = vshrl.u32 %v237, 7
    %v239 = vsub.s32 0, %v238
    %v240 = vrot.slane %v51, %v239
    %v241 = vlaneseq
    %v242 = vshrl.u32 %v241, 7
    %v243 = vsub.s32 0, %v242
    %v244 = vrot.slane %v52, %v243
    %v245 = vmul.f32 %v235, %v240
    %v246 = vmul.f32 %v235, %v244
    %v247 = vadd.f32 %v231, %v245
    %v248 = vadd.f32 %v232, %v246
    %249 = vset.pattern.permute.xlu0 12
    %250 = vperm.xlu0 %249, %v28
    %v251 = vpop.permute.xlu0 %250
    %v253 = vlaneseq
    %v254 = vshrl.u32 %v253, 7
    %v255 = vsub.s32 1, %v254
    %v256 = vrot.slane %v51, %v255
    %v257 = vlaneseq
    %v258 = vshrl.u32 %v257, 7
    %v259 = vsub.s32 1, %v258
    %v260 = vrot.slane %v52, %v259
    %v261 = vmul.f32 %v251, %v256
    %v262 = vmul.f32 %v251, %v260
    %v263 = vadd.f32 %v247, %v261
    %v264 = vadd.f32 %v248, %v262
    %265 = vset.pattern.permute.xlu0 21
    %266 = vperm.xlu0 %265, %v28
    %v267 = vpop.permute.xlu0 %266
    %v269 = vlaneseq
    %v270 = vshrl.u32 %v269, 7
    %v271 = vsub.s32 2, %v270
    %v272 = vrot.slane %v51, %v271
    %v273 = vlaneseq
    %v274 = vshrl.u32 %v273, 7
    %v275 = vsub.s32 2, %v274
    %v276 = vrot.slane %v52, %v275
    %v277 = vmul.f32 %v267, %v272
    %v278 = vmul.f32 %v267, %v276
    %v279 = vadd.f32 %v263, %v277
    %v280 = vadd.f32 %v264, %v278
    %281 = vset.pattern.permute.xlu0 4
    %282 = vperm.xlu0 %281, %v28
    %v283 = vpop.permute.xlu0 %282
    %v285 = vlaneseq
    %v286 = vshrl.u32 %v285, 7
    %v287 = vsub.s32 0, %v286
    %v288 = vrot.slane %v58, %v287
    %v289 = vlaneseq
    %v290 = vshrl.u32 %v289, 7
    %v291 = vsub.s32 0, %v290
    %v292 = vrot.slane %v59, %v291
    %v293 = vmul.f32 %v283, %v288
    %v294 = vmul.f32 %v283, %v292
    %v295 = vadd.f32 %v279, %v293
    %v296 = vadd.f32 %v280, %v294
    %297 = vset.pattern.permute.xlu0 13
    %298 = vperm.xlu0 %297, %v28
    %v299 = vpop.permute.xlu0 %298
    %v301 = vlaneseq
    %v302 = vshrl.u32 %v301, 7
    %v303 = vsub.s32 1, %v302
    %v304 = vrot.slane %v58, %v303
    %v305 = vlaneseq
    %v306 = vshrl.u32 %v305, 7
    %v307 = vsub.s32 1, %v306
    %v308 = vrot.slane %v59, %v307
    %v309 = vmul.f32 %v299, %v304
    %v310 = vmul.f32 %v299, %v308
    %v311 = vadd.f32 %v295, %v309
    %v312 = vadd.f32 %v296, %v310
    %313 = vset.pattern.permute.xlu0 22
    %314 = vperm.xlu0 %313, %v28
    %v315 = vpop.permute.xlu0 %314
    %v317 = vlaneseq
    %v318 = vshrl.u32 %v317, 7
    %v319 = vsub.s32 2, %v318
    %v320 = vrot.slane %v58, %v319
    %v321 = vlaneseq
    %v322 = vshrl.u32 %v321, 7
    %v323 = vsub.s32 2, %v322
    %v324 = vrot.slane %v59, %v323
    %v325 = vmul.f32 %v315, %v320
    %v326 = vmul.f32 %v315, %v324
    %v327 = vadd.f32 %v311, %v325
    %v328 = vadd.f32 %v312, %v326
    %329 = vset.pattern.permute.xlu0 5
    %330 = vperm.xlu0 %329, %v28
    %v331 = vpop.permute.xlu0 %330
    %v333 = vlaneseq
    %v334 = vshrl.u32 %v333, 7
    %v335 = vsub.s32 0, %v334
    %v336 = vrot.slane %v65, %v335
    %v337 = vlaneseq
    %v338 = vshrl.u32 %v337, 7
    %v339 = vsub.s32 0, %v338
    %v340 = vrot.slane %v66, %v339
    %v341 = vmul.f32 %v331, %v336
    %v342 = vmul.f32 %v331, %v340
    %v343 = vadd.f32 %v327, %v341
    %v344 = vadd.f32 %v328, %v342
    %345 = vset.pattern.permute.xlu0 14
    %346 = vperm.xlu0 %345, %v28
    %v347 = vpop.permute.xlu0 %346
    %v349 = vlaneseq
    %v350 = vshrl.u32 %v349, 7
    %v351 = vsub.s32 1, %v350
    %v352 = vrot.slane %v65, %v351
    %v353 = vlaneseq
    %v354 = vshrl.u32 %v353, 7
    %v355 = vsub.s32 1, %v354
    %v356 = vrot.slane %v66, %v355
    %v357 = vmul.f32 %v347, %v352
    %v358 = vmul.f32 %v347, %v356
    %v359 = vadd.f32 %v343, %v357
    %v360 = vadd.f32 %v344, %v358
    %361 = vset.pattern.permute.xlu0 23
    %362 = vperm.xlu0 %361, %v28
    %v363 = vpop.permute.xlu0 %362
    %v365 = vlaneseq
    %v366 = vshrl.u32 %v365, 7
    %v367 = vsub.s32 2, %v366
    %v368 = vrot.slane %v65, %v367
    %v369 = vlaneseq
    %v370 = vshrl.u32 %v369, 7
    %v371 = vsub.s32 2, %v370
    %v372 = vrot.slane %v66, %v371
    %v373 = vmul.f32 %v363, %v368
    %v374 = vmul.f32 %v363, %v372
    %v375 = vadd.f32 %v359, %v373
    %v376 = vadd.f32 %v360, %v374
    %377 = vset.pattern.permute.xlu0 6
    %378 = vperm.xlu0 %377, %v28
    %v379 = vpop.permute.xlu0 %378
    %v381 = vlaneseq
    %v382 = vshrl.u32 %v381, 7
    %v383 = vsub.s32 0, %v382
    %v384 = vrot.slane %v72, %v383
    %v385 = vlaneseq
    %v386 = vshrl.u32 %v385, 7
    %v387 = vsub.s32 0, %v386
    %v388 = vrot.slane %v73, %v387
    %v389 = vmul.f32 %v379, %v384
    %v390 = vmul.f32 %v379, %v388
    %v391 = vadd.f32 %v375, %v389
    %v392 = vadd.f32 %v376, %v390
    %393 = vset.pattern.permute.xlu0 15
    %394 = vperm.xlu0 %393, %v28
    %v395 = vpop.permute.xlu0 %394
    %v397 = vlaneseq
    %v398 = vshrl.u32 %v397, 7
    %v399 = vsub.s32 1, %v398
    %v400 = vrot.slane %v72, %v399
    %v401 = vlaneseq
    %v402 = vshrl.u32 %v401, 7
    %v403 = vsub.s32 1, %v402
    %v404 = vrot.slane %v73, %v403
    %v405 = vmul.f32 %v395, %v400
    %v406 = vmul.f32 %v395, %v404
    %v407 = vadd.f32 %v391, %v405
    %v408 = vadd.f32 %v392, %v406
    %409 = vset.pattern.permute.xlu0 24
    %410 = vperm.xlu0 %409, %v28
    %v411 = vpop.permute.xlu0 %410
    %v413 = vlaneseq
    %v414 = vshrl.u32 %v413, 7
    %v415 = vsub.s32 2, %v414
    %v416 = vrot.slane %v72, %v415
    %v417 = vlaneseq
    %v418 = vshrl.u32 %v417, 7
    %v419 = vsub.s32 2, %v418
    %v420 = vrot.slane %v73, %v419
    %v421 = vmul.f32 %v411, %v416
    %v422 = vmul.f32 %v411, %v420
    %v423 = vadd.f32 %v407, %v421
    %v424 = vadd.f32 %v408, %v422
    %425 = vset.pattern.permute.xlu0 7
    %426 = vperm.xlu0 %425, %v28
    %v427 = vpop.permute.xlu0 %426
    %v429 = vlaneseq
    %v430 = vshrl.u32 %v429, 7
    %v431 = vsub.s32 0, %v430
    %v432 = vrot.slane %v79, %v431
    %v433 = vlaneseq
    %v434 = vshrl.u32 %v433, 7
    %v435 = vsub.s32 0, %v434
    %v436 = vrot.slane %v80, %v435
    %v437 = vmul.f32 %v427, %v432
    %v438 = vmul.f32 %v427, %v436
    %v439 = vadd.f32 %v423, %v437
    %v440 = vadd.f32 %v424, %v438
    %441 = vset.pattern.permute.xlu0 16
    %442 = vperm.xlu0 %441, %v28
    %v443 = vpop.permute.xlu0 %442
    %v445 = vlaneseq
    %v446 = vshrl.u32 %v445, 7
    %v447 = vsub.s32 1, %v446
    %v448 = vrot.slane %v79, %v447
    %v449 = vlaneseq
    %v450 = vshrl.u32 %v449, 7
    %v451 = vsub.s32 1, %v450
    %v452 = vrot.slane %v80, %v451
    %v453 = vmul.f32 %v443, %v448
    %v454 = vmul.f32 %v443, %v452
    %v455 = vadd.f32 %v439, %v453
    %v456 = vadd.f32 %v440, %v454
    %457 = vset.pattern.permute.xlu0 25
    %458 = vperm.xlu0 %457, %v28
    %v459 = vpop.permute.xlu0 %458
    %v461 = vlaneseq
    %v462 = vshrl.u32 %v461, 7
    %v463 = vsub.s32 2, %v462
    %v464 = vrot.slane %v79, %v463
    %v465 = vlaneseq
    %v466 = vshrl.u32 %v465, 7
    %v467 = vsub.s32 2, %v466
    %v468 = vrot.slane %v80, %v467
    %v469 = vmul.f32 %v459, %v464
    %v470 = vmul.f32 %v459, %v468
    %v471 = vadd.f32 %v455, %v469
    %v472 = vadd.f32 %v456, %v470
    %473 = vset.pattern.permute.xlu0 8
    %474 = vperm.xlu0 %473, %v28
    %v475 = vpop.permute.xlu0 %474
    %v477 = vlaneseq
    %v478 = vshrl.u32 %v477, 7
    %v479 = vsub.s32 0, %v478
    %v480 = vrot.slane %v86, %v479
    %v481 = vlaneseq
    %v482 = vshrl.u32 %v481, 7
    %v483 = vsub.s32 0, %v482
    %v484 = vrot.slane %v87, %v483
    %v485 = vmul.f32 %v475, %v480
    %v486 = vmul.f32 %v475, %v484
    %v487 = vadd.f32 %v471, %v485
    %v488 = vadd.f32 %v472, %v486
    %489 = vset.pattern.permute.xlu0 17
    %490 = vperm.xlu0 %489, %v28
    %v491 = vpop.permute.xlu0 %490
    %v493 = vlaneseq
    %v494 = vshrl.u32 %v493, 7
    %v495 = vsub.s32 1, %v494
    %v496 = vrot.slane %v86, %v495
    %v497 = vlaneseq
    %v498 = vshrl.u32 %v497, 7
    %v499 = vsub.s32 1, %v498
    %v500 = vrot.slane %v87, %v499
    %v501 = vmul.f32 %v491, %v496
    %v502 = vmul.f32 %v491, %v500
    %v503 = vadd.f32 %v487, %v501
    %v504 = vadd.f32 %v488, %v502
    %505 = vset.pattern.permute.xlu0 26
    %506 = vperm.xlu0 %505, %v28
    %v507 = vpop.permute.xlu0 %506
    %v509 = vlaneseq
    %v510 = vshrl.u32 %v509, 7
    %v511 = vsub.s32 2, %v510
    %v512 = vrot.slane %v86, %v511
    %v513 = vlaneseq
    %v514 = vshrl.u32 %v513, 7
    %v515 = vsub.s32 2, %v514
    %v516 = vrot.slane %v87, %v515
    %v517 = vmul.f32 %v507, %v512
    %v518 = vmul.f32 %v507, %v516
    %v519 = vadd.f32 %v503, %v517
    %v520 = vadd.f32 %v504, %v518
    %522 = vset.pattern.permute.xlu0 0
    %523 = vperm.xlu0 %522, %v29
    %v524 = vpop.permute.xlu0 %523
    %v526 = vadd.f32 %v519, %v524
    %v527 = vadd.f32 %v520, %v524
    %v528 = vmul.f32 %v526, 0.01
    %v529 = vmul.f32 %v527, 0.01
    %v530 = vmax.f32 %v526, %v528
    %v531 = vmax.f32 %v527, %v529
    %532 = vst [vmem:[%s3] sm:$0x3f] %v530
    %533 = vst [vmem:[%s3 + $0x8] sm:$0x3f] %v531
    %v534 = vlaneseq
    %v535 = vshrl.u32 %v534, 7
    %v536 = vsub.s32 3, %v535
    %v537 = vrot.slane %v26, %v536
    %v538 = vlaneseq
    %v539 = vshrl.u32 %v538, 7
    %v540 = vsub.s32 3, %v539
    %v541 = vrot.slane %v27, %v540
    %v542 = vmul.f32 %v91, %v537
    %v543 = vmul.f32 %v91, %v541
    %v544 = vadd.f32 %v542, 0.0
    %v545 = vadd.f32 %v543, 0.0
    %v546 = vlaneseq
    %v547 = vshrl.u32 %v546, 7
    %v548 = vsub.s32 4, %v547
    %v549 = vrot.slane %v26, %v548
    %v550 = vlaneseq
    %v551 = vshrl.u32 %v550, 7
    %v552 = vsub.s32 4, %v551
    %v553 = vrot.slane %v27, %v552
    %v554 = vmul.f32 %v107, %v549
    %v555 = vmul.f32 %v107, %v553
    %v556 = vadd.f32 %v544, %v554
    %v557 = vadd.f32 %v545, %v555
    %v558 = vlaneseq
    %v559 = vshrl.u32 %v558, 7
    %v560 = vsub.s32 5, %v559
    %v561 = vrot.slane %v26, %v560
    %v562 = vlaneseq
    %v563 = vshrl.u32 %v562, 7
    %v564 = vsub.s32 5, %v563
    %v565 = vrot.slane %v27, %v564
    %v566 = vmul.f32 %v123, %v561
    %v567 = vmul.f32 %v123, %v565
    %v568 = vadd.f32 %v556, %v566
    %v569 = vadd.f32 %v557, %v567
    %v570 = vlaneseq
    %v571 = vshrl.u32 %v570, 7
    %v572 = vsub.s32 3, %v571
    %v573 = vrot.slane %v37, %v572
    %v574 = vlaneseq
    %v575 = vshrl.u32 %v574, 7
    %v576 = vsub.s32 3, %v575
    %v577 = vrot.slane %v38, %v576
    %v578 = vmul.f32 %v139, %v573
    %v579 = vmul.f32 %v139, %v577
    %v580 = vadd.f32 %v568, %v578
    %v581 = vadd.f32 %v569, %v579
    %v582 = vlaneseq
    %v583 = vshrl.u32 %v582, 7
    %v584 = vsub.s32 4, %v583
    %v585 = vrot.slane %v37, %v584
    %v586 = vlaneseq
    %v587 = vshrl.u32 %v586, 7
    %v588 = vsub.s32 4, %v587
    %v589 = vrot.slane %v38, %v588
    %v590 = vmul.f32 %v155, %v585
    %v591 = vmul.f32 %v155, %v589
    %v592 = vadd.f32 %v580, %v590
    %v593 = vadd.f32 %v581, %v591
    %v594 = vlaneseq
    %v595 = vshrl.u32 %v594, 7
    %v596 = vsub.s32 5, %v595
    %v597 = vrot.slane %v37, %v596
    %v598 = vlaneseq
    %v599 = vshrl.u32 %v598, 7
    %v600 = vsub.s32 5, %v599
    %v601 = vrot.slane %v38, %v600
    %v602 = vmul.f32 %v171, %v597
    %v603 = vmul.f32 %v171, %v601
    %v604 = vadd.f32 %v592, %v602
    %v605 = vadd.f32 %v593, %v603
    %v606 = vlaneseq
    %v607 = vshrl.u32 %v606, 7
    %v608 = vsub.s32 3, %v607
    %v609 = vrot.slane %v44, %v608
    %v610 = vlaneseq
    %v611 = vshrl.u32 %v610, 7
    %v612 = vsub.s32 3, %v611
    %v613 = vrot.slane %v45, %v612
    %v614 = vmul.f32 %v187, %v609
    %v615 = vmul.f32 %v187, %v613
    %v616 = vadd.f32 %v604, %v614
    %v617 = vadd.f32 %v605, %v615
    %v618 = vlaneseq
    %v619 = vshrl.u32 %v618, 7
    %v620 = vsub.s32 4, %v619
    %v621 = vrot.slane %v44, %v620
    %v622 = vlaneseq
    %v623 = vshrl.u32 %v622, 7
    %v624 = vsub.s32 4, %v623
    %v625 = vrot.slane %v45, %v624
    %v626 = vmul.f32 %v203, %v621
    %v627 = vmul.f32 %v203, %v625
    %v628 = vadd.f32 %v616, %v626
    %v629 = vadd.f32 %v617, %v627
    %v630 = vlaneseq
    %v631 = vshrl.u32 %v630, 7
    %v632 = vsub.s32 5, %v631
    %v633 = vrot.slane %v44, %v632
    %v634 = vlaneseq
    %v635 = vshrl.u32 %v634, 7
    %v636 = vsub.s32 5, %v635
    %v637 = vrot.slane %v45, %v636
    %v638 = vmul.f32 %v219, %v633
    %v639 = vmul.f32 %v219, %v637
    %v640 = vadd.f32 %v628, %v638
    %v641 = vadd.f32 %v629, %v639
    %v642 = vlaneseq
    %v643 = vshrl.u32 %v642, 7
    %v644 = vsub.s32 3, %v643
    %v645 = vrot.slane %v51, %v644
    %v646 = vlaneseq
    %v647 = vshrl.u32 %v646, 7
    %v648 = vsub.s32 3, %v647
    %v649 = vrot.slane %v52, %v648
    %v650 = vmul.f32 %v235, %v645
    %v651 = vmul.f32 %v235, %v649
    %v652 = vadd.f32 %v640, %v650
    %v653 = vadd.f32 %v641, %v651
    %v654 = vlaneseq
    %v655 = vshrl.u32 %v654, 7
    %v656 = vsub.s32 4, %v655
    %v657 = vrot.slane %v51, %v656
    %v658 = vlaneseq
    %v659 = vshrl.u32 %v658, 7
    %v660 = vsub.s32 4, %v659
    %v661 = vrot.slane %v52, %v660
    %v662 = vmul.f32 %v251, %v657
    %v663 = vmul.f32 %v251, %v661
    %v664 = vadd.f32 %v652, %v662
    %v665 = vadd.f32 %v653, %v663
    %v666 = vlaneseq
    %v667 = vshrl.u32 %v666, 7
    %v668 = vsub.s32 5, %v667
    %v669 = vrot.slane %v51, %v668
    %v670 = vlaneseq
    %v671 = vshrl.u32 %v670, 7
    %v672 = vsub.s32 5, %v671
    %v673 = vrot.slane %v52, %v672
    %v674 = vmul.f32 %v267, %v669
    %v675 = vmul.f32 %v267, %v673
    %v676 = vadd.f32 %v664, %v674
    %v677 = vadd.f32 %v665, %v675
    %v678 = vlaneseq
    %v679 = vshrl.u32 %v678, 7
    %v680 = vsub.s32 3, %v679
    %v681 = vrot.slane %v58, %v680
    %v682 = vlaneseq
    %v683 = vshrl.u32 %v682, 7
    %v684 = vsub.s32 3, %v683
    %v685 = vrot.slane %v59, %v684
    %v686 = vmul.f32 %v283, %v681
    %v687 = vmul.f32 %v283, %v685
    %v688 = vadd.f32 %v676, %v686
    %v689 = vadd.f32 %v677, %v687
    %v690 = vlaneseq
    %v691 = vshrl.u32 %v690, 7
    %v692 = vsub.s32 4, %v691
    %v693 = vrot.slane %v58, %v692
    %v694 = vlaneseq
    %v695 = vshrl.u32 %v694, 7
    %v696 = vsub.s32 4, %v695
    %v697 = vrot.slane %v59, %v696
    %v698 = vmul.f32 %v299, %v693
    %v699 = vmul.f32 %v299, %v697
    %v700 = vadd.f32 %v688, %v698
    %v701 = vadd.f32 %v689, %v699
    %v702 = vlaneseq
    %v703 = vshrl.u32 %v702, 7
    %v704 = vsub.s32 5, %v703
    %v705 = vrot.slane %v58, %v704
    %v706 = vlaneseq
    %v707 = vshrl.u32 %v706, 7
    %v708 = vsub.s32 5, %v707
    %v709 = vrot.slane %v59, %v708
    %v710 = vmul.f32 %v315, %v705
    %v711 = vmul.f32 %v315, %v709
    %v712 = vadd.f32 %v700, %v710
    %v713 = vadd.f32 %v701, %v711
    %v714 = vlaneseq
    %v715 = vshrl.u32 %v714, 7
    %v716 = vsub.s32 3, %v715
    %v717 = vrot.slane %v65, %v716
    %v718 = vlaneseq
    %v719 = vshrl.u32 %v718, 7
    %v720 = vsub.s32 3, %v719
    %v721 = vrot.slane %v66, %v720
    %v722 = vmul.f32 %v331, %v717
    %v723 = vmul.f32 %v331, %v721
    %v724 = vadd.f32 %v712, %v722
    %v725 = vadd.f32 %v713, %v723
    %v726 = vlaneseq
    %v727 = vshrl.u32 %v726, 7
    %v728 = vsub.s32 4, %v727
    %v729 = vrot.slane %v65, %v728
    %v730 = vlaneseq
    %v731 = vshrl.u32 %v730, 7
    %v732 = vsub.s32 4, %v731
    %v733 = vrot.slane %v66, %v732
    %v734 = vmul.f32 %v347, %v729
    %v735 = vmul.f32 %v347, %v733
    %v736 = vadd.f32 %v724, %v734
    %v737 = vadd.f32 %v725, %v735
    %v738 = vlaneseq
    %v739 = vshrl.u32 %v738, 7
    %v740 = vsub.s32 5, %v739
    %v741 = vrot.slane %v65, %v740
    %v742 = vlaneseq
    %v743 = vshrl.u32 %v742, 7
    %v744 = vsub.s32 5, %v743
    %v745 = vrot.slane %v66, %v744
    %v746 = vmul.f32 %v363, %v741
    %v747 = vmul.f32 %v363, %v745
    %v748 = vadd.f32 %v736, %v746
    %v749 = vadd.f32 %v737, %v747
    %v750 = vlaneseq
    %v751 = vshrl.u32 %v750, 7
    %v752 = vsub.s32 3, %v751
    %v753 = vrot.slane %v72, %v752
    %v754 = vlaneseq
    %v755 = vshrl.u32 %v754, 7
    %v756 = vsub.s32 3, %v755
    %v757 = vrot.slane %v73, %v756
    %v758 = vmul.f32 %v379, %v753
    %v759 = vmul.f32 %v379, %v757
    %v760 = vadd.f32 %v748, %v758
    %v761 = vadd.f32 %v749, %v759
    %v762 = vlaneseq
    %v763 = vshrl.u32 %v762, 7
    %v764 = vsub.s32 4, %v763
    %v765 = vrot.slane %v72, %v764
    %v766 = vlaneseq
    %v767 = vshrl.u32 %v766, 7
    %v768 = vsub.s32 4, %v767
    %v769 = vrot.slane %v73, %v768
    %v770 = vmul.f32 %v395, %v765
    %v771 = vmul.f32 %v395, %v769
    %v772 = vadd.f32 %v760, %v770
    %v773 = vadd.f32 %v761, %v771
    %v774 = vlaneseq
    %v775 = vshrl.u32 %v774, 7
    %v776 = vsub.s32 5, %v775
    %v777 = vrot.slane %v72, %v776
    %v778 = vlaneseq
    %v779 = vshrl.u32 %v778, 7
    %v780 = vsub.s32 5, %v779
    %v781 = vrot.slane %v73, %v780
    %v782 = vmul.f32 %v411, %v777
    %v783 = vmul.f32 %v411, %v781
    %v784 = vadd.f32 %v772, %v782
    %v785 = vadd.f32 %v773, %v783
    %v786 = vlaneseq
    %v787 = vshrl.u32 %v786, 7
    %v788 = vsub.s32 3, %v787
    %v789 = vrot.slane %v79, %v788
    %v790 = vlaneseq
    %v791 = vshrl.u32 %v790, 7
    %v792 = vsub.s32 3, %v791
    %v793 = vrot.slane %v80, %v792
    %v794 = vmul.f32 %v427, %v789
    %v795 = vmul.f32 %v427, %v793
    %v796 = vadd.f32 %v784, %v794
    %v797 = vadd.f32 %v785, %v795
    %v798 = vlaneseq
    %v799 = vshrl.u32 %v798, 7
    %v800 = vsub.s32 4, %v799
    %v801 = vrot.slane %v79, %v800
    %v802 = vlaneseq
    %v803 = vshrl.u32 %v802, 7
    %v804 = vsub.s32 4, %v803
    %v805 = vrot.slane %v80, %v804
    %v806 = vmul.f32 %v443, %v801
    %v807 = vmul.f32 %v443, %v805
    %v808 = vadd.f32 %v796, %v806
    %v809 = vadd.f32 %v797, %v807
    %v810 = vlaneseq
    %v811 = vshrl.u32 %v810, 7
    %v812 = vsub.s32 5, %v811
    %v813 = vrot.slane %v79, %v812
    %v814 = vlaneseq
    %v815 = vshrl.u32 %v814, 7
    %v816 = vsub.s32 5, %v815
    %v817 = vrot.slane %v80, %v816
    %v818 = vmul.f32 %v459, %v813
    %v819 = vmul.f32 %v459, %v817
    %v820 = vadd.f32 %v808, %v818
    %v821 = vadd.f32 %v809, %v819
    %v822 = vlaneseq
    %v823 = vshrl.u32 %v822, 7
    %v824 = vsub.s32 3, %v823
    %v825 = vrot.slane %v86, %v824
    %v826 = vlaneseq
    %v827 = vshrl.u32 %v826, 7
    %v828 = vsub.s32 3, %v827
    %v829 = vrot.slane %v87, %v828
    %v830 = vmul.f32 %v475, %v825
    %v831 = vmul.f32 %v475, %v829
    %v832 = vadd.f32 %v820, %v830
    %v833 = vadd.f32 %v821, %v831
    %v834 = vlaneseq
    %v835 = vshrl.u32 %v834, 7
    %v836 = vsub.s32 4, %v835
    %v837 = vrot.slane %v86, %v836
    %v838 = vlaneseq
    %v839 = vshrl.u32 %v838, 7
    %v840 = vsub.s32 4, %v839
    %v841 = vrot.slane %v87, %v840
    %v842 = vmul.f32 %v491, %v837
    %v843 = vmul.f32 %v491, %v841
    %v844 = vadd.f32 %v832, %v842
    %v845 = vadd.f32 %v833, %v843
    %v846 = vlaneseq
    %v847 = vshrl.u32 %v846, 7
    %v848 = vsub.s32 5, %v847
    %v849 = vrot.slane %v86, %v848
    %v850 = vlaneseq
    %v851 = vshrl.u32 %v850, 7
    %v852 = vsub.s32 5, %v851
    %v853 = vrot.slane %v87, %v852
    %v854 = vmul.f32 %v507, %v849
    %v855 = vmul.f32 %v507, %v853
    %v856 = vadd.f32 %v844, %v854
    %v857 = vadd.f32 %v845, %v855
    %v858 = vadd.f32 %v856, %v524
    %v859 = vadd.f32 %v857, %v524
    %v860 = vmul.f32 %v858, 0.01
    %v861 = vmul.f32 %v859, 0.01
    %v862 = vmax.f32 %v858, %v860
    %v863 = vmax.f32 %v859, %v861
    %s864 = scalar_lea.vmem %s3, 16
    %865 = vst [vmem:[%s864] sm:$0x3f] %v862
    %866 = vst [vmem:[%s864 + $0x8] sm:$0x3f] %v863
    // Predicated region
    $region18: #{tpu_custom_call.1} parent=1 // pred_check
      _
    $region19: #{tpu_custom_call.1} parent=1 // pred_check_branch
      %868 = sbr.rel (0) target = $region21
    $region20: #{tpu_custom_call.1} parent=1 // pred_region
      _
    $region21: #{tpu_custom_call.1} parent=1 // pred_fallthru
      _
    // Predicated region
    $region22: #{tpu_custom_call.1} parent=1 // pred_check
      _
    $region23: #{tpu_custom_call.1} parent=1 // pred_check_branch
      %870 = sbr.rel (0) target = $region25
    $region24: #{tpu_custom_call.1} parent=1 // pred_region
      _
    $region25: #{tpu_custom_call.1} parent=1 // pred_fallthru
      _
    %871 = vsyncpa [#allocation3], 1

</llo_original>
